<compile_context>
chip_gen: v5e
topology: v5e:2x2
jax: 0.10.0
libtpu: 0.0.40
codegen_flags: <defaults>
</compile_context>

<pallas_src>
import jax
import jax.numpy as jnp
from jax.experimental import pallas as pl
from jax.experimental.pallas import tpu as pltpu

HIDDEN1 = 128
HIDDEN2 = 64
OUT_DIM = 2
LANE = 128          # lane-dense output width (OUT_DIM padded to 128)
MAX_TILE_B = 1024   # batch rows per grid step; tiny VMEM footprint on v5e/v6e/v7x


def _mlp_kernel(x_ref, w1_ref, b1_ref, w2_ref, b2_ref, w3_ref, b3_ref, o_ref):
    # Layer 1: (TB, obs) @ (obs, 128) + (1, 128), ReLU
    h1 = jnp.dot(x_ref[...], w1_ref[...], preferred_element_type=jnp.float32)
    h1 = jnp.maximum(h1 + b1_ref[...], 0.0)
    # Layer 2: (TB, 128) @ (128, 64) + (1, 64), ReLU
    h2 = jnp.dot(h1, w2_ref[...], preferred_element_type=jnp.float32)
    h2 = jnp.maximum(h2 + b2_ref[...], 0.0)
    # Layer 3 (padded to 128 output lanes -> lane-dense store)
    o = jnp.dot(h2, w3_ref[...], preferred_element_type=jnp.float32)
    o_ref[...] = (o + b3_ref[...]).astype(o_ref.dtype)


def _round_up(n, m):
    return ((n + m - 1) // m) * m


def rl_loop_agent_forward(x, params):
    """RLLoopAgent MLP forward pass via Pallas.

    x: (B, obs_size) float32
    params: w1 (obs,128), b1 (1,128), w2 (128,64), b2 (1,64), w3 (64,2), b3 (1,2)
    returns: (B, 2) float32
    """
    B, obs_size = x.shape

    # Pad the final layer to a lane-dense (64,128)/(1,128); extra cols are zero,
    # so cols >= OUT_DIM of the kernel output are exactly zero and get sliced off.
    w3p = jnp.zeros((HIDDEN2, LANE), jnp.float32).at[:, :OUT_DIM].set(params["w3"])
    b3p = jnp.zeros((1, LANE), jnp.float32).at[:, :OUT_DIM].set(params["b3"])

    # Batch tile: multiple of 8 sublanes, capped so double-buffered x/out tiles
    # plus h1/h2 live values stay well under the scoped VMEM limit on all gens.
    tb = min(MAX_TILE_B, _round_up(B, 8))
    b_pad = _round_up(B, tb)
    xp = x if b_pad == B else jnp.pad(x, ((0, b_pad - B), (0, 0)))

    args = (xp, params["w1"], params["b1"], params["w2"], params["b2"], w3p, b3p)
    out_shape = jax.ShapeDtypeStruct((b_pad, LANE), jnp.float32)
    n_tiles = b_pad // tb

    if n_tiles == 1:
        # Small batch: single whole-array call, no grid / loop bookkeeping.
        out = pl.pallas_call(_mlp_kernel, out_shape=out_shape)(*args)
    else:
        resident = lambda i: (0, 0)  # weights/biases stay in VMEM across steps
        in_specs = [
            pl.BlockSpec((tb, obs_size), lambda i: (i, 0)),   # x tile (pipelined)
            pl.BlockSpec((obs_size, HIDDEN1), resident),      # w1
            pl.BlockSpec((1, HIDDEN1), resident),             # b1
            pl.BlockSpec((HIDDEN1, HIDDEN2), resident),       # w2
            pl.BlockSpec((1, HIDDEN2), resident),             # b2
            pl.BlockSpec((HIDDEN2, LANE), resident),          # w3 (padded)
            pl.BlockSpec((1, LANE), resident),                # b3 (padded)
        ]
        out = pl.pallas_call(
            _mlp_kernel,
            out_shape=out_shape,
            grid=(n_tiles,),
            in_specs=in_specs,
            out_specs=pl.BlockSpec((tb, LANE), lambda i: (i, 0)),
            compiler_params=pltpu.CompilerParams(
                dimension_semantics=("parallel",),   # v7x: shard batch over 2 TCs
                vmem_limit_bytes=32 << 20,           # safe on v7x's 64 MiB VMEM
            ),
        )(*args)

    return out[:B, :OUT_DIM]


def init_params(key, obs_size):
    """Deterministic synthetic parameter init (matches nn.Linear shapes)."""
    k1, k2, k3, k4, k5, k6 = jax.random.split(key, 6)

    def u(k, shape, fan_in):
        bound = 1.0 / jnp.sqrt(fan_in)
        return jax.random.uniform(k, shape, jnp.float32, -bound, bound)

    return {
        "w1": u(k1, (obs_size, HIDDEN1), obs_size),
        "b1": u(k2, (1, HIDDEN1), obs_size),
        "w2": u(k3, (HIDDEN1, HIDDEN2), HIDDEN1),
        "b2": u(k4, (1, HIDDEN2), HIDDEN1),
        "w3": u(k5, (HIDDEN2, OUT_DIM), HIDDEN2),
        "b3": u(k6, (1, OUT_DIM), HIDDEN2),
    }


def _reference(x, p):
    h1 = jnp.maximum(x @ p["w1"] + p["b1"], 0.0)
    h2 = jnp.maximum(h1 @ p["w2"] + p["b2"], 0.0)
    return h2 @ p["w3"] + p["b3"]


if __name__ == "__main__":
    obs_size = 32
    key = jax.random.PRNGKey(0)
    kx, kp, kx2 = jax.random.split(key, 3)
    params = init_params(kp, obs_size)

    # Small batch (RL stepping): exercises the gridless whole-array path.
    batch = 8
    x = jax.random.normal(kx, (batch, obs_size), jnp.float32)
    out = jax.block_until_ready(rl_loop_agent_forward(x, params))
    ref = _reference(x, params)
    assert out.shape == (batch, OUT_DIM)
    assert jnp.allclose(out, ref, atol=1e-5, rtol=1e-5), "small-batch mismatch"

    # Large ragged batch (vectorized envs): exercises the batch-tiled grid path
    # with resident weights, batch padding, and lane-dense output.
    big_batch = 2050
    x2 = jax.random.normal(kx2, (big_batch, obs_size), jnp.float32)
    out2 = jax.block_until_ready(rl_loop_agent_forward(x2, params))
    ref2 = _reference(x2, params)
    assert out2.shape == (big_batch, OUT_DIM)
    assert jnp.allclose(out2, ref2, atol=1e-5, rtol=1e-5), "tiled-batch mismatch"

    print("KERNEL_OK")
</pallas_src>

<mosaic_0001>
module attributes {stable_mosaic.version = 11 : i64} {
  func.func @_mlp_kernel(%arg0: memref<8x32xf32, #tpu.memory_space<vmem>>, %arg1: memref<32x128xf32, #tpu.memory_space<vmem>>, %arg2: memref<1x128xf32, #tpu.memory_space<vmem>>, %arg3: memref<128x64xf32, #tpu.memory_space<vmem>>, %arg4: memref<1x64xf32, #tpu.memory_space<vmem>>, %arg5: memref<64x128xf32, #tpu.memory_space<vmem>>, %arg6: memref<1x128xf32, #tpu.memory_space<vmem>>, %arg7: memref<8x128xf32, #tpu.memory_space<vmem>>) attributes {dimension_semantics = [], scalar_prefetch = 0 : i64, scratch_operands = 0 : i64, tpu.core_type = #tpu.core_type<tc>} {
    %c0 = arith.constant 0 : index
    %c0_0 = arith.constant 0 : index
    %0 = vector.load %arg0[%c0, %c0_0] : memref<8x32xf32, #tpu.memory_space<vmem>>, vector<8x32xf32>
    %c0_1 = arith.constant 0 : index
    %c0_2 = arith.constant 0 : index
    %1 = vector.load %arg1[%c0_1, %c0_2] : memref<32x128xf32, #tpu.memory_space<vmem>>, vector<32x128xf32>
    %cst = arith.constant dense<0.000000e+00> : vector<8x128xf32>
    %2 = tpu.matmul %0, %1, %cst {dimension_numbers = #tpu.dot_dimension_numbers<[1], [0], [0], [1], [0, 0, 1, 1], [], []>} : vector<8x32xf32>, vector<32x128xf32>, vector<8x128xf32> -> vector<8x128xf32>
    %c0_3 = arith.constant 0 : index
    %c0_4 = arith.constant 0 : index
    %3 = vector.load %arg2[%c0_3, %c0_4] : memref<1x128xf32, #tpu.memory_space<vmem>>, vector<1x128xf32>
    %4 = vector.broadcast %3 : vector<1x128xf32> to vector<8x128xf32>
    %5 = arith.addf %2, %4 : vector<8x128xf32>
    %cst_5 = arith.constant 0.000000e+00 : f32
    %6 = vector.broadcast %cst_5 : f32 to vector<8x128xf32>
    %7 = arith.maximumf %5, %6 : vector<8x128xf32>
    %c0_6 = arith.constant 0 : index
    %c0_7 = arith.constant 0 : index
    %8 = vector.load %arg3[%c0_6, %c0_7] : memref<128x64xf32, #tpu.memory_space<vmem>>, vector<128x64xf32>
    %cst_8 = arith.constant dense<0.000000e+00> : vector<8x64xf32>
    %9 = tpu.matmul %7, %8, %cst_8 {dimension_numbers = #tpu.dot_dimension_numbers<[1], [0], [0], [1], [0, 0, 1, 1], [], []>} : vector<8x128xf32>, vector<128x64xf32>, vector<8x64xf32> -> vector<8x64xf32>
    %c0_9 = arith.constant 0 : index
    %c0_10 = arith.constant 0 : index
    %10 = vector.load %arg4[%c0_9, %c0_10] : memref<1x64xf32, #tpu.memory_space<vmem>>, vector<1x64xf32>
    %11 = vector.broadcast %10 : vector<1x64xf32> to vector<8x64xf32>
    %12 = arith.addf %9, %11 : vector<8x64xf32>
    %cst_11 = arith.constant 0.000000e+00 : f32
    %13 = vector.broadcast %cst_11 : f32 to vector<8x64xf32>
    %14 = arith.maximumf %12, %13 : vector<8x64xf32>
    %c0_12 = arith.constant 0 : index
    %c0_13 = arith.constant 0 : index
    %15 = vector.load %arg5[%c0_12, %c0_13] : memref<64x128xf32, #tpu.memory_space<vmem>>, vector<64x128xf32>
    %cst_14 = arith.constant dense<0.000000e+00> : vector<8x128xf32>
    %16 = tpu.matmul %14, %15, %cst_14 {dimension_numbers = #tpu.dot_dimension_numbers<[1], [0], [0], [1], [0, 0, 1, 1], [], []>} : vector<8x64xf32>, vector<64x128xf32>, vector<8x128xf32> -> vector<8x128xf32>
    %c0_15 = arith.constant 0 : index
    %c0_16 = arith.constant 0 : index
    %17 = vector.load %arg6[%c0_15, %c0_16] : memref<1x128xf32, #tpu.memory_space<vmem>>, vector<1x128xf32>
    %18 = vector.broadcast %17 : vector<1x128xf32> to vector<8x128xf32>
    %19 = arith.addf %16, %18 : vector<8x128xf32>
    %c0_17 = arith.constant 0 : index
    %c0_18 = arith.constant 0 : index
    %20 = vector.load %arg7[%c0_17, %c0_18] : memref<8x128xf32, #tpu.memory_space<vmem>>, vector<8x128xf32>
    tpu.vector_store %arg7[%c0_17, %c0_18], %19 {strides = array<i32>} : memref<8x128xf32, #tpu.memory_space<vmem>>, vector<8x128xf32>,
    return
  }
}

</mosaic_0001>

<llo_original>
// kernel: tpu_custom_call.1
$region0: #{tpu_custom_call.1}
  #allocation0 [shape = 'u32[]', space=smem, size = 0x4, offset = 0x4, fixed_abs, tag = 'smem constant byte address 0x4 - core index']
  #allocation1 [shape = 'u32[72,128]{1,0:T(1,128)}', space=vmem, size = 0x9000, scoped, tag = 'internal scratch']
  %s0 = inlined_call_operand.vmem [shape: f32[8,32], index: 0, kind: input, shape index: {}]
  %s1 = inlined_call_operand.vmem [shape: f32[32,128], index: 1, kind: input, shape index: {}]
  %s2 = inlined_call_operand.vmem [shape: f32[1,128], index: 2, kind: input, shape index: {}]
  %s3 = inlined_call_operand.vmem [shape: f32[128,64], index: 3, kind: input, shape index: {}]
  %s4 = inlined_call_operand.vmem [shape: f32[1,64], index: 4, kind: input, shape index: {}]
  %s5 = inlined_call_operand.vmem [shape: f32[64,128], index: 5, kind: input, shape index: {}]
  %s6 = inlined_call_operand.vmem [shape: f32[1,128], index: 6, kind: input, shape index: {}]
  %s7 = inlined_call_operand.hbm [shape: f32[8,128], index: 7, kind: output, shape index: {}]
  %s8 = sld [smem:[#allocation0]]
  $region38: #{tpu_custom_call.1} parent=0
    _
  %s10 = ssub.s32 1, %s8
  %s11 = scalar_select 0, %s10, %s8
  $region1: #{tpu_custom_call.1} parent=0
    #allocation2 [shape = 'u8[4096]{0}', space=vmem, size = 0x1000, scoped, tag = 'output window, operand 0, single buffered']
    #allocation3 [shape = 's32[1]{0}', space=sflag, size = 0x4, scoped, tag = 'scoped memory for tpu_custom_call.1']
    %12 = vsyncpa [#allocation3], 0
    // Predicated region
    $region2: #{tpu_custom_call.1} parent=1 // pred_check
      _
    $region3: #{tpu_custom_call.1} parent=1 // pred_check_branch
      %14 = sbr.rel (0) target = $region5
    $region4: #{tpu_custom_call.1} parent=1 // pred_region
      _
    $region5: #{tpu_custom_call.1} parent=1 // pred_fallthru
      _
    // Predicated region
    $region6: #{tpu_custom_call.1} parent=1 // pred_check
      _
    $region7: #{tpu_custom_call.1} parent=1 // pred_check_branch
      %16 = sbr.rel (0) target = $region9
    $region8: #{tpu_custom_call.1} parent=1 // pred_region
      _
    $region9: #{tpu_custom_call.1} parent=1 // pred_fallthru
      _
    // Predicated region
    $region10: #{tpu_custom_call.1} parent=1 // pred_check
      _
    $region11: #{tpu_custom_call.1} parent=1 // pred_check_branch
      %18 = sbr.rel (0) target = $region13
    $region12: #{tpu_custom_call.1} parent=1 // pred_region
      _
    $region13: #{tpu_custom_call.1} parent=1 // pred_fallthru
      _
    // Predicated region
    $region14: #{tpu_custom_call.1} parent=1 // pred_check
      _
    $region15: #{tpu_custom_call.1} parent=1 // pred_check_branch
      %20 = sbr.rel (0) target = $region17
    $region16: #{tpu_custom_call.1} parent=1 // pred_region
      _
    $region17: #{tpu_custom_call.1} parent=1 // pred_fallthru
      _
    // Predicated region
    $region18: #{tpu_custom_call.1} parent=1 // pred_check
      _
    $region19: #{tpu_custom_call.1} parent=1 // pred_check_branch
      %22 = sbr.rel (0) target = $region21
    $region20: #{tpu_custom_call.1} parent=1 // pred_region
      _
    $region21: #{tpu_custom_call.1} parent=1 // pred_fallthru
      _
    // Predicated region
    $region22: #{tpu_custom_call.1} parent=1 // pred_check
      _
    $region23: #{tpu_custom_call.1} parent=1 // pred_check_branch
      %24 = sbr.rel (0) target = $region25
    $region24: #{tpu_custom_call.1} parent=1 // pred_region
      _
    $region25: #{tpu_custom_call.1} parent=1 // pred_fallthru
      _
    // Predicated region
    $region26: #{tpu_custom_call.1} parent=1 // pred_check
      _
    $region27: #{tpu_custom_call.1} parent=1 // pred_check_branch
      %26 = sbr.rel (0) target = $region29
    $region28: #{tpu_custom_call.1} parent=1 // pred_region
      _
    $region29: #{tpu_custom_call.1} parent=1 // pred_fallthru
      _
    %v27 = vld [vmem:[%s0] sm:$0xff]
    %v28 = vld [vmem:[%s1] sm:$0xff]
    %v29 = vld [vmem:[%s1 + $0x8] sm:$0xff]
    %v30 = vld [vmem:[%s1 + $0x10] sm:$0xff]
    %v31 = vld [vmem:[%s1 + $0x18] sm:$0xff]
    %v32 = vld [vmem:[%s2] sm:$0x1]
    %v34 = vperm.slane %v32, 0
    %vm36 = vcmask 261120
    %v38 = vsel %vm36, %v27, 0
    %40 = vmatpush.msra.mxu0 0.0
    %41 = vmatpush.msra.mxu0 0.0
    %42 = vmatpush.msra.mxu0 0.0
    %43 = vmatpush.msra.mxu0 0.0
    %44 = vmatpush.msra.mxu0 0.0
    %45 = vmatpush.msra.mxu0 0.0
    %46 = vmatpush.msra.mxu0 0.0
    %47 = vmatpush.msra.mxu0 0.0
    %48 = vmatpush.msra.mxu0 0.0
    %49 = vmatpush.msra.mxu0 0.0
    %50 = vmatpush.msra.mxu0 0.0
    %51 = vmatpush.msra.mxu0 0.0
    %52 = vmatpush.msra.mxu0 %v31
    %53 = vmatpush.msra.mxu0 %v30
    %54 = vmatpush.msra.mxu0 %v29
    %55 = vmatpush.msra.mxu0 %v28
    %56 = vmatmul.f32.gmra.mxu0 %v38
    %v57 = vpop.f32.mrf.mxu0
    %v58 = vadd.f32 %v34, %v57
    %59 = vdwg.mxu0
    %v60 = vmax.f32 %v58, 0.0
    %v61 = vld [vmem:[%s3] sm:$0xff]
    %v62 = vld [vmem:[%s3 + $0x8] sm:$0xff]
    %v63 = vld [vmem:[%s3 + $0x10] sm:$0xff]
    %v64 = vld [vmem:[%s3 + $0x18] sm:$0xff]
    %v65 = vld [vmem:[%s3 + $0x20] sm:$0xff]
    %v66 = vld [vmem:[%s3 + $0x28] sm:$0xff]
    %v67 = vld [vmem:[%s3 + $0x30] sm:$0xff]
    %v68 = vld [vmem:[%s3 + $0x38] sm:$0xff]
    %v69 = vld [vmem:[%s3 + $0x40] sm:$0xff]
    %v70 = vld [vmem:[%s3 + $0x48] sm:$0xff]
    %v71 = vld [vmem:[%s3 + $0x50] sm:$0xff]
    %v72 = vld [vmem:[%s3 + $0x58] sm:$0xff]
    %v73 = vld [vmem:[%s3 + $0x60] sm:$0xff]
    %v74 = vld [vmem:[%s3 + $0x68] sm:$0xff]
    %v75 = vld [vmem:[%s3 + $0x70] sm:$0xff]
    %v76 = vld [vmem:[%s3 + $0x78] sm:$0xff]
    %v77 = vld [vmem:[%s4] sm:$0x1]
    %v79 = vperm.slane %v77, 0
    %81 = vmatpush.msra.mxu0 %v76
    %82 = vmatpush.msra.mxu0 %v75
    %83 = vmatpush.msra.mxu0 %v74
    %84 = vmatpush.msra.mxu0 %v73
    %85 = vmatpush.msra.mxu0 %v72
    %86 = vmatpush.msra.mxu0 %v71
    %87 = vmatpush.msra.mxu0 %v70
    %88 = vmatpush.msra.mxu0 %v69
    %89 = vmatpush.msra.mxu0 %v68
    %90 = vmatpush.msra.mxu0 %v67
    %91 = vmatpush.msra.mxu0 %v66
    %92 = vmatpush.msra.mxu0 %v65
    %93 = vmatpush.msra.mxu0 %v64
    %94 = vmatpush.msra.mxu0 %v63
    %95 = vmatpush.msra.mxu0 %v62
    %96 = vmatpush.msra.mxu0 %v61
    %97 = vmatmul.f32.gmra.mxu0 %v60
    %v98 = vpop.f32.mrf.mxu0
    %v99 = vadd.f32 %v79, %v98
    %100 = vdwg.mxu0
    %v101 = vmax.f32 %v99, 0.0
    %v102 = vld [vmem:[%s5] sm:$0xff]
    %v103 = vld [vmem:[%s5 + $0x8] sm:$0xff]
    %v104 = vld [vmem:[%s5 + $0x10] sm:$0xff]
    %v105 = vld [vmem:[%s5 + $0x18] sm:$0xff]
    %v106 = vld [vmem:[%s5 + $0x20] sm:$0xff]
    %v107 = vld [vmem:[%s5 + $0x28] sm:$0xff]
    %v108 = vld [vmem:[%s5 + $0x30] sm:$0xff]
    %v109 = vld [vmem:[%s5 + $0x38] sm:$0xff]
    %v110 = vld [vmem:[%s6] sm:$0x1]
    %v112 = vperm.slane %v110, 0
    %vm114 = vcmask 523264
    %v116 = vsel %vm114, %v101, 0
    %118 = vmatpush.msra.mxu0 0.0
    %119 = vmatpush.msra.mxu0 0.0
    %120 = vmatpush.msra.mxu0 0.0
    %121 = vmatpush.msra.mxu0 0.0
    %122 = vmatpush.msra.mxu0 0.0
    %123 = vmatpush.msra.mxu0 0.0
    %124 = vmatpush.msra.mxu0 0.0
    %125 = vmatpush.msra.mxu0 0.0
    %126 = vmatpush.msra.mxu0 %v109
    %127 = vmatpush.msra.mxu0 %v108
    %128 = vmatpush.msra.mxu0 %v107
    %129 = vmatpush.msra.mxu0 %v106
    %130 = vmatpush.msra.mxu0 %v105
    %131 = vmatpush.msra.mxu0 %v104
    %132 = vmatpush.msra.mxu0 %v103
    %133 = vmatpush.msra.mxu0 %v102
    %134 = vmatmul.f32.gmra.mxu0 %v116
    %v135 = vpop.f32.mrf.mxu0
    %v136 = vadd.f32 %v112, %v135
    %137 = vdwg.mxu0
    %138 = vst [vmem:[#allocation2] sm:$0xff] %v136
    // Predicated region
    $region30: #{tpu_custom_call.1} parent=1 // pred_check
      _
    $region31: #{tpu_custom_call.1} parent=1 // pred_check_branch
      %140 = sbr.rel (0) target = $region33
    $region32: #{tpu_custom_call.1} parent=1 // pred_region
      %142 = vsyncadd [#allocation3], 0
      %s144 = sshll.u32 [#allocation2], 4
      %s145 = int_to_ptr.vmem [resolvable:$true] %s144
      %s146 = sshll.u32 %s7, 4
      %s147 = int_to_ptr.hbm [resolvable:$true] %s146
      %149 = dma.vmem_to_hbm [thread:$0]  %s145, 128, %s147, [#allocation3]
    $region33: #{tpu_custom_call.1} parent=1 // pred_fallthru
      _
    // Predicated region
    $region34: #{tpu_custom_call.1} parent=1 // pred_check
      _
    $region35: #{tpu_custom_call.1} parent=1 // pred_check_branch
      %151 = sbr.rel (0) target = $region37
    $region36: #{tpu_custom_call.1} parent=1 // pred_region
      %153 = dma.done [#allocation3], 128
    $region37: #{tpu_custom_call.1} parent=1 // pred_fallthru
      _
    %154 = vsyncpa [#allocation3], 1

</llo_original>
